<compile_context>
chip_gen: v5e
topology: v5e:2x2
jax: 0.10.0
libtpu: 0.0.40
codegen_flags: <defaults>
</compile_context>

<pallas_src>
import jax
import jax.numpy as jnp
from jax.experimental import pallas as pl
from jax.experimental.pallas import tpu as pltpu


def _round_up(n: int, m: int) -> int:
    return ((n + m - 1) // m) * m


def _vmem_limit_bytes() -> int:
    """Generation-aware VMEM budget (leave ~20% headroom for Mosaic scratch)."""
    cap = 128 * 1024 * 1024
    try:
        info = pltpu.get_tpu_info()
        cap = int(getattr(info, "vmem_capacity_bytes", cap) or cap)
    except Exception:
        pass
    return int(cap * 0.8)


def _make_kernel(c_real: int):
    """Kernel body closed over the true channel count (for LayerNorm stats)."""
    inv_c = 1.0 / float(c_real)

    def kernel(x_ref, gamma_ref, beta_ref, w1_ref, b1_ref, w2_ref, b2_ref, o_ref):
        # Load the token tile; do all elementwise math in f32 (v5e-safe).
        x = x_ref[...].astype(jnp.float32)

        # LayerNorm over the real channel count.  Padded lanes of x are zero,
        # so plain sums over the padded axis are exact (no mask needed).
        mean = jnp.sum(x, axis=-1, keepdims=True) * inv_c
        ex2 = jnp.sum(x * x, axis=-1, keepdims=True) * inv_c
        var = ex2 - mean * mean
        # gamma/beta are zero in padded lanes => xn is exactly 0 there.
        xn = (x - mean) * jax.lax.rsqrt(var + 1e-5) * gamma_ref[...] + beta_ref[...]

        # proj: Linear -> GELU (tanh approx on EUP) -> Linear.
        # bf16 operands into the MXU, f32 accumulation.
        h = jnp.dot(xn.astype(jnp.bfloat16), w1_ref[...],
                    preferred_element_type=jnp.float32) + b1_ref[...]
        h = jax.nn.gelu(h, approximate=True)
        y = jnp.dot(h.astype(jnp.bfloat16), w2_ref[...],
                    preferred_element_type=jnp.float32) + b2_ref[...]

        # Residual on the post-norm activation: xn + proj(xn).
        o_ref[...] = (xn + y).astype(o_ref.dtype)

    return kernel


def prepare_params(gamma, beta, w1, b1, w2, b2):
    """One-time parameter prep: zero-pad channel axes to a lane-dense multiple
    of 128 and cast weights to bf16 for the MXU.  Call once at init so the
    per-forward critical path carries no weight cast/pad traffic."""
    C = gamma.shape[0]
    C_pad = max(128, _round_up(C, 128))

    def pad_row(p):  # (C,) -> (1, C_pad) f32
        return jnp.pad(p.astype(jnp.float32), (0, C_pad - C)).reshape(1, C_pad)

    def pad_w(w):    # (C, C) (already (in,out)) -> (C_pad, C_pad) bf16
        return jnp.pad(w.astype(jnp.bfloat16), ((0, C_pad - C), (0, C_pad - C)))

    return (pad_row(gamma), pad_row(beta), pad_w(w1), pad_row(b1),
            pad_w(w2), pad_row(b2))


def simple_res_block(x, gamma2, beta2, w1p, b1_2, w2p, b2_2, *, tm=512):
    """x: (..., C) unpadded.  Remaining args come from prepare_params()."""
    orig_shape = x.shape
    C = orig_shape[-1]
    C_pad = w1p.shape[-1]
    x2d = x.reshape(-1, C)
    N = x2d.shape[0]
    x_bytes = jnp.dtype(x.dtype).itemsize

    # ---- VMEM-aware row-tile selection -----------------------------------
    vmem_limit = _vmem_limit_bytes()
    # Resident single-buffered bf16 weights + (tiny) f32 row params.
    fixed = 2 * C_pad * C_pad * 2 + 4 * C_pad * 4
    # Per token row: double-buffered in/out tiles + ~16 B/elem of live
    # f32/bf16 temporaries (xn, xn_bf16, h, h_bf16, y) inside the kernel.
    per_row = (2 * x_bytes + 2 * x_bytes + 16) * C_pad
    avail = vmem_limit - fixed
    tm_max = max(8, (max(avail, 0) // per_row) // 8 * 8)
    # TODO(synk): for very large C (resident weights alone exceed VMEM, e.g.
    # C >~ 2.5k on v7x) tile the hidden dimension with a second "arbitrary"
    # grid axis and an f32 accumulator instead of keeping both weights resident.

    # Keep at least two grid steps so the token axis can shard across both
    # TensorCores on v7x (harmless single extra step on v5e/v6e).
    two_step = _round_up(max(1, -(-N // 2)), 8)
    tm_eff = max(8, min(tm, tm_max, two_step))

    # Pad rows only to the sublane granule; the last grid step is ragged
    # (out-of-bounds reads are row-local garbage, OOB writes are dropped).
    N_pad = _round_up(max(N, 1), 8)
    x2d = jnp.pad(x2d, ((0, N_pad - N), (0, C_pad - C)))

    grid = (pl.cdiv(N_pad, tm_eff),)

    # Constant index maps -> single-buffer the resident operands.
    row_spec = pl.BlockSpec((1, C_pad), lambda i: (0, 0),
                            pipeline_mode=pl.Buffered(1))
    w_spec = pl.BlockSpec((C_pad, C_pad), lambda i: (0, 0),
                          pipeline_mode=pl.Buffered(1))

    out = pl.pallas_call(
        _make_kernel(C),
        out_shape=jax.ShapeDtypeStruct((N_pad, C_pad), x.dtype),
        grid_spec=pltpu.PrefetchScalarGridSpec(
            num_scalar_prefetch=0,
            grid=grid,
            in_specs=[
                pl.BlockSpec((tm_eff, C_pad), lambda i: (i, 0)),  # x tile
                row_spec,   # gamma
                row_spec,   # beta
                w_spec,     # w1 (bf16, resident, single-buffered)
                row_spec,   # b1
                w_spec,     # w2 (bf16, resident, single-buffered)
                row_spec,   # b2
            ],
            out_specs=pl.BlockSpec((tm_eff, C_pad), lambda i: (i, 0)),
        ),
        compiler_params=pltpu.CompilerParams(
            dimension_semantics=("parallel",),   # token axis shards across TCs
            vmem_limit_bytes=vmem_limit,
        ),
    )(x2d, gamma2, beta2, w1p, b1_2, w2p, b2_2)

    out = out[:N, :C]
    return out.reshape(orig_shape)


def _reference(x, gamma, beta, w1, b1, w2, b2):
    # Pure-JAX f32 reference matching the PyTorch module (exact-erf GELU).
    x = x.astype(jnp.float32)
    mean = jnp.mean(x, axis=-1, keepdims=True)
    var = jnp.mean((x - mean) ** 2, axis=-1, keepdims=True)
    xn = (x - mean) * jax.lax.rsqrt(var + 1e-5) * gamma + beta
    h = jax.nn.gelu(xn @ w1 + b1, approximate=False)
    return xn + (h @ w2 + b2)


if __name__ == "__main__":
    key = jax.random.PRNGKey(0)
    batch, seq, channels = 2, 9, 32   # seq=9 exercises the ragged-tile path

    k_x, k_g, k_b, k_w1, k_b1, k_w2, k_b2 = jax.random.split(key, 7)

    x = jax.random.normal(k_x, (batch, seq, channels), dtype=jnp.float32)

    # Deterministic synthetic parameters (shapes from SimpleResBlock.__init__).
    gamma = 1.0 + 0.1 * jax.random.normal(k_g, (channels,), dtype=jnp.float32)
    beta = 0.1 * jax.random.normal(k_b, (channels,), dtype=jnp.float32)
    # PyTorch nn.Linear weight is (out,in); store pre-transposed (in,out).
    bound = 1.0 / (channels ** 0.5)
    w1 = jax.random.uniform(k_w1, (channels, channels), jnp.float32, -bound, bound)
    b1 = jax.random.uniform(k_b1, (channels,), jnp.float32, -bound, bound)
    w2 = jax.random.uniform(k_w2, (channels, channels), jnp.float32, -bound, bound)
    b2 = jax.random.uniform(k_b2, (channels,), jnp.float32, -bound, bound)

    # Prepare (pad + bf16-cast) parameters ONCE at init.
    params = prepare_params(gamma, beta, w1, b1, w2, b2)
    params = jax.block_until_ready(params)

    run = jax.jit(simple_res_block)
    out = jax.block_until_ready(run(x, *params))

    ref = _reference(x, gamma, beta, w1, b1, w2, b2)
    assert out.shape == x.shape
    # Tolerance vs. the f32/erf reference: the kernel uses bf16 MXU operands
    # and tanh-approx GELU (f32 accumulation / elementwise math).
    assert jnp.allclose(out, ref, atol=5e-2, rtol=5e-2), "mismatch vs reference"

    print("KERNEL_OK")
</pallas_src>

<mosaic_0001>
module attributes {stable_mosaic.version = 11 : i64} {
  func.func @kernel(%arg0: i32, %arg1: memref<16x128xf32, #tpu.memory_space<vmem>>, %arg2: memref<1x128xf32, #tpu.memory_space<vmem>>, %arg3: memref<1x128xf32, #tpu.memory_space<vmem>>, %arg4: memref<128x128xbf16, #tpu.memory_space<vmem>>, %arg5: memref<1x128xf32, #tpu.memory_space<vmem>>, %arg6: memref<128x128xbf16, #tpu.memory_space<vmem>>, %arg7: memref<1x128xf32, #tpu.memory_space<vmem>>, %arg8: memref<16x128xf32, #tpu.memory_space<vmem>>) attributes {dimension_semantics = [#tpu.dimension_semantics<parallel>], iteration_bounds = array<i64: 2>, scalar_prefetch = 0 : i64, scratch_operands = 0 : i64, tpu.core_type = #tpu.core_type<tc>, window_params = [{transform_indices = @transform_0, window_bounds = array<i64: 16, 128>}, {pipeline_mode = #tpu.pipeline_mode<synchronous>, transform_indices = @transform_1, window_bounds = array<i64: 1, 128>}, {pipeline_mode = #tpu.pipeline_mode<synchronous>, transform_indices = @transform_2, window_bounds = array<i64: 1, 128>}, {pipeline_mode = #tpu.pipeline_mode<synchronous>, transform_indices = @transform_3, window_bounds = array<i64: 128, 128>}, {pipeline_mode = #tpu.pipeline_mode<synchronous>, transform_indices = @transform_4, window_bounds = array<i64: 1, 128>}, {pipeline_mode = #tpu.pipeline_mode<synchronous>, transform_indices = @transform_5, window_bounds = array<i64: 128, 128>}, {pipeline_mode = #tpu.pipeline_mode<synchronous>, transform_indices = @transform_6, window_bounds = array<i64: 1, 128>}, {transform_indices = @transform_7, window_bounds = array<i64: 16, 128>}]} {
    %c0 = arith.constant 0 : index
    %c0_0 = arith.constant 0 : index
    %0 = vector.load %arg1[%c0, %c0_0] : memref<16x128xf32, #tpu.memory_space<vmem>>, vector<16x128xf32>
    %cst = arith.constant dense<0.000000e+00> : vector<16xf32>
    %1 = vector.multi_reduction <add>, %0, %cst [1] : vector<16x128xf32> to vector<16xf32>
    %2 = vector.shape_cast %1 : vector<16xf32> to vector<16x1xf32>
    %cst_1 = arith.constant 3.125000e-02 : f32
    %3 = vector.broadcast %cst_1 : f32 to vector<16x1xf32>
    %4 = arith.mulf %2, %3 : vector<16x1xf32>
    %5 = arith.mulf %0, %0 : vector<16x128xf32>
    %cst_2 = arith.constant dense<0.000000e+00> : vector<16xf32>
    %6 = vector.multi_reduction <add>, %5, %cst_2 [1] : vector<16x128xf32> to vector<16xf32>
    %7 = vector.shape_cast %6 : vector<16xf32> to vector<16x1xf32>
    %cst_3 = arith.constant 3.125000e-02 : f32
    %8 = vector.broadcast %cst_3 : f32 to vector<16x1xf32>
    %9 = arith.mulf %7, %8 : vector<16x1xf32>
    %10 = arith.mulf %4, %4 : vector<16x1xf32>
    %11 = arith.subf %9, %10 : vector<16x1xf32>
    %12 = vector.broadcast %4 : vector<16x1xf32> to vector<16x128xf32>
    %13 = arith.subf %0, %12 : vector<16x128xf32>
    %cst_4 = arith.constant 9.99999974E-6 : f32
    %14 = vector.broadcast %cst_4 : f32 to vector<16x1xf32>
    %15 = arith.addf %11, %14 : vector<16x1xf32>
    %16 = math.rsqrt %15 : vector<16x1xf32>
    %17 = vector.broadcast %16 : vector<16x1xf32> to vector<16x128xf32>
    %18 = arith.mulf %13, %17 : vector<16x128xf32>
    %c0_5 = arith.constant 0 : index
    %c0_6 = arith.constant 0 : index
    %19 = vector.load %arg2[%c0_5, %c0_6] : memref<1x128xf32, #tpu.memory_space<vmem>>, vector<1x128xf32>
    %20 = vector.broadcast %19 : vector<1x128xf32> to vector<16x128xf32>
    %21 = arith.mulf %18, %20 : vector<16x128xf32>
    %c0_7 = arith.constant 0 : index
    %c0_8 = arith.constant 0 : index
    %22 = vector.load %arg3[%c0_7, %c0_8] : memref<1x128xf32, #tpu.memory_space<vmem>>, vector<1x128xf32>
    %23 = vector.broadcast %22 : vector<1x128xf32> to vector<16x128xf32>
    %24 = arith.addf %21, %23 : vector<16x128xf32>
    %25 = arith.truncf %24 : vector<16x128xf32> to vector<16x128xbf16>
    %c0_9 = arith.constant 0 : index
    %c0_10 = arith.constant 0 : index
    %26 = vector.load %arg4[%c0_9, %c0_10] : memref<128x128xbf16, #tpu.memory_space<vmem>>, vector<128x128xbf16>
    %cst_11 = arith.constant dense<0.000000e+00> : vector<16x128xf32>
    %27 = tpu.matmul %25, %26, %cst_11 {dimension_numbers = #tpu.dot_dimension_numbers<[1], [0], [0], [1], [0, 0, 1, 1], [], []>} : vector<16x128xbf16>, vector<128x128xbf16>, vector<16x128xf32> -> vector<16x128xf32>
    %c0_12 = arith.constant 0 : index
    %c0_13 = arith.constant 0 : index
    %28 = vector.load %arg5[%c0_12, %c0_13] : memref<1x128xf32, #tpu.memory_space<vmem>>, vector<1x128xf32>
    %29 = vector.broadcast %28 : vector<1x128xf32> to vector<16x128xf32>
    %30 = arith.addf %27, %29 : vector<16x128xf32>
    %31 = arith.mulf %30, %30 : vector<16x128xf32>
    %32 = arith.mulf %30, %31 : vector<16x128xf32>
    %cst_14 = arith.constant 4.471500e-02 : f32
    %33 = vector.broadcast %cst_14 : f32 to vector<16x128xf32>
    %34 = arith.mulf %33, %32 : vector<16x128xf32>
    %35 = arith.addf %30, %34 : vector<16x128xf32>
    %cst_15 = arith.constant 0.797884583 : f32
    %36 = vector.broadcast %cst_15 : f32 to vector<16x128xf32>
    %37 = arith.mulf %36, %35 : vector<16x128xf32>
    %38 = math.tanh %37 : vector<16x128xf32>
    %cst_16 = arith.constant 1.000000e+00 : f32
    %39 = vector.broadcast %cst_16 : f32 to vector<16x128xf32>
    %40 = arith.addf %39, %38 : vector<16x128xf32>
    %cst_17 = arith.constant 5.000000e-01 : f32
    %41 = vector.broadcast %cst_17 : f32 to vector<16x128xf32>
    %42 = arith.mulf %41, %40 : vector<16x128xf32>
    %43 = arith.mulf %30, %42 : vector<16x128xf32>
    %44 = arith.truncf %43 : vector<16x128xf32> to vector<16x128xbf16>
    %c0_18 = arith.constant 0 : index
    %c0_19 = arith.constant 0 : index
    %45 = vector.load %arg6[%c0_18, %c0_19] : memref<128x128xbf16, #tpu.memory_space<vmem>>, vector<128x128xbf16>
    %cst_20 = arith.constant dense<0.000000e+00> : vector<16x128xf32>
    %46 = tpu.matmul %44, %45, %cst_20 {dimension_numbers = #tpu.dot_dimension_numbers<[1], [0], [0], [1], [0, 0, 1, 1], [], []>} : vector<16x128xbf16>, vector<128x128xbf16>, vector<16x128xf32> -> vector<16x128xf32>
    %c0_21 = arith.constant 0 : index
    %c0_22 = arith.constant 0 : index
    %47 = vector.load %arg7[%c0_21, %c0_22] : memref<1x128xf32, #tpu.memory_space<vmem>>, vector<1x128xf32>
    %48 = vector.broadcast %47 : vector<1x128xf32> to vector<16x128xf32>
    %49 = arith.addf %46, %48 : vector<16x128xf32>
    %50 = arith.addf %24, %49 : vector<16x128xf32>
    %c0_23 = arith.constant 0 : index
    %c0_24 = arith.constant 0 : index
    %51 = vector.load %arg8[%c0_23, %c0_24] : memref<16x128xf32, #tpu.memory_space<vmem>>, vector<16x128xf32>
    tpu.vector_store %arg8[%c0_23, %c0_24], %50 {strides = array<i32>} : memref<16x128xf32, #tpu.memory_space<vmem>>, vector<16x128xf32>,
    return
  }
  func.func @transform_0(%arg0: i32) -> (i32, i32) {
    %c0_i32 = arith.constant 0 : i32
    %c0_i32_0 = arith.constant 0 : i32
    return %arg0, %c0_i32 : i32, i32
  }
  func.func @transform_1(%arg0: i32) -> (i32, i32) {
    %c0_i32 = arith.constant 0 : i32
    %c0_i32_0 = arith.constant 0 : i32
    %c0_i32_1 = arith.constant 0 : i32
    return %c0_i32, %c0_i32_0 : i32, i32
  }
  func.func @transform_2(%arg0: i32) -> (i32, i32) {
    %c0_i32 = arith.constant 0 : i32
    %c0_i32_0 = arith.constant 0 : i32
    %c0_i32_1 = arith.constant 0 : i32
    return %c0_i32, %c0_i32_0 : i32, i32
  }
  func.func @transform_3(%arg0: i32) -> (i32, i32) {
    %c0_i32 = arith.constant 0 : i32
    %c0_i32_0 = arith.constant 0 : i32
    %c0_i32_1 = arith.constant 0 : i32
    return %c0_i32, %c0_i32_0 : i32, i32
  }
  func.func @transform_4(%arg0: i32) -> (i32, i32) {
    %c0_i32 = arith.constant 0 : i32
    %c0_i32_0 = arith.constant 0 : i32
    %c0_i32_1 = arith.constant 0 : i32
    return %c0_i32, %c0_i32_0 : i32, i32
  }
  func.func @transform_5(%arg0: i32) -> (i32, i32) {
    %c0_i32 = arith.constant 0 : i32
    %c0_i32_0 = arith.constant 0 : i32
    %c0_i32_1 = arith.constant 0 : i32
    return %c0_i32, %c0_i32_0 : i32, i32
  }
  func.func @transform_6(%arg0: i32) -> (i32, i32) {
    %c0_i32 = arith.constant 0 : i32
    %c0_i32_0 = arith.constant 0 : i32
    %c0_i32_1 = arith.constant 0 : i32
    return %c0_i32, %c0_i32_0 : i32, i32
  }
  func.func @transform_7(%arg0: i32) -> (i32, i32) {
    %c0_i32 = arith.constant 0 : i32
    %c0_i32_0 = arith.constant 0 : i32
    return %arg0, %c0_i32 : i32, i32
  }
}

</mosaic_0001>

<llo_original>
// kernel: simple_res_block.1
$region0: #{simple_res_block.1}
  #allocation0 [shape = 'u32[]', space=smem, size = 0x4, offset = 0x4, fixed_abs, tag = 'smem constant byte address 0x4 - core index']
  #allocation1 [shape = 'u32[72,128]{1,0:T(1,128)}', space=vmem, size = 0x9000, scoped, tag = 'internal scratch']
  %s0 = inlined_call_operand.vmem [shape: f32[24,128], index: 0, kind: input, shape index: {}]
  %s1 = inlined_call_operand.vmem [shape: f32[1,128], index: 1, kind: input, shape index: {}]
  %s2 = inlined_call_operand.vmem [shape: f32[1,128], index: 2, kind: input, shape index: {}]
  %s3 = inlined_call_operand.vmem [shape: bf16[128,128], index: 3, kind: input, shape index: {}]
  %s4 = inlined_call_operand.vmem [shape: f32[1,128], index: 4, kind: input, shape index: {}]
  %s5 = inlined_call_operand.vmem [shape: bf16[128,128], index: 5, kind: input, shape index: {}]
  %s6 = inlined_call_operand.vmem [shape: f32[1,128], index: 6, kind: input, shape index: {}]
  %s7 = inlined_call_operand.vmem [shape: f32[24,128], index: 7, kind: output, shape index: {}]
  %s8 = sld [smem:[#allocation0]]
  $region109: #{simple_res_block.1} parent=0
    _
  %s10 = ssub.s32 1, %s8
  %s11 = scalar_select 0, %s10, %s8
  $region1: #{simple_res_block.1} parent=0
    #allocation2 [shape = 'u8[16384]{0}', space=vmem, size = 0x4000, scoped, tag = 'output window, operand 0']
    loop: start=0, step=1, limit=4
    $region2: #{simple_res_block.1} parent=1 // loop_pre_header
      _
    $region3: #{simple_res_block.1} parent=1 // loop_header
      %s13 = sphi 0, %s17
      %p14 = scmp.ge.s32.totalorder %s13, 4
      %s23 = sphi 0, %s25
      %s26 = sphi 0, %s23
      %s27 = sphi 0, %s26
      %s43 = sphi 0, %s27
      %s47 = sphi 0, %s47
      %s49 = sphi 0, %s47
      %s50 = sphi 0, %s49
      %s64 = sphi 0, %s50
      %s68 = sphi 0, %s68
      %s70 = sphi 0, %s68
      %s71 = sphi 0, %s70
      %s85 = sphi 0, %s71
      %s89 = sphi 0, %s89
      %s91 = sphi 0, %s89
      %s92 = sphi 0, %s91
      %s106 = sphi 0, %s92
      %s110 = sphi 0, %s110
      %s112 = sphi 0, %s110
      %s113 = sphi 0, %s112
      %s127 = sphi 0, %s113
      %s131 = sphi 0, %s131
      %s133 = sphi 0, %s131
      %s134 = sphi 0, %s133
      %s148 = sphi 0, %s134
      %s152 = sphi 0, %s152
      %s154 = sphi 0, %s152
      %s155 = sphi 0, %s154
      %s169 = sphi 0, %s155
      %s175 = sphi 0, %s177
      %s178 = sphi 0, %s175
      %s179 = sphi 0, %s178
      %s195 = sphi 0, %s179
    $region4: #{simple_res_block.1} parent=1 // loop_header_branch
      %16 = sbr.rel (%p14) target = $region8
    $region5: #{simple_res_block.1} parent=1 // loop_body
      %s18 = ssub.s32 %s13, 1
      %s19 = ssub.s32 %s13, 2
      %s20 = sadd.s32 %s13, 1
      %s21 = ssub.s32 %s13, %s20
      %p22 = scmp.eq.s32.totalorder %s21, 0
      %s24 = sadd.s32 %s23, 1
      %s25 = scalar_select %p22, %s23, %s24
      %p28 = pneg %p22
      %p29 = scmp.eq.s32.totalorder %s13, 1
      %p30 = por %p28, %p29
      %p31 = scmp.ne.s32.totalorder %s23, %s26
      %p32 = scmp.eq.s32.totalorder %s13, 0
      %p33 = por %p31, %p32
      %p34 = scmp.ne.s32.totalorder %s23, %s26
      %p35 = scmp.eq.s32.totalorder %s18, 1
      %p36 = por %p34, %p35
      %p37 = scmp.ne.s32.totalorder %s26, %s27
      %p38 = scmp.eq.s32.totalorder %s18, 0
      %p39 = por %p37, %p38
      %p40 = scmp.ne.s32.totalorder %s26, %s27
      %p41 = scmp.eq.s32.totalorder %s19, 1
      %p42 = por %p40, %p41
      %p44 = scmp.ne.s32.totalorder %s27, %s43
      %p45 = scmp.eq.s32.totalorder %s19, 0
      %p46 = por %p44, %p45
      %s48 = sadd.s32 %s47, 1
      %p51 = scmp.eq.s32.totalorder %s13, 1
      %p52 = scmp.ne.s32.totalorder %s47, %s49
      %p53 = scmp.eq.s32.totalorder %s13, 0
      %p54 = por %p52, %p53
      %p55 = scmp.ne.s32.totalorder %s47, %s49
      %p56 = scmp.eq.s32.totalorder %s18, 1
      %p57 = por %p55, %p56
      %p58 = scmp.ne.s32.totalorder %s49, %s50
      %p59 = scmp.eq.s32.totalorder %s18, 0
      %p60 = por %p58, %p59
      %p61 = scmp.ne.s32.totalorder %s49, %s50
      %p62 = scmp.eq.s32.totalorder %s19, 1
      %p63 = por %p61, %p62
      %p65 = scmp.ne.s32.totalorder %s50, %s64
      %p66 = scmp.eq.s32.totalorder %s19, 0
      %p67 = por %p65, %p66
      %s69 = sadd.s32 %s68, 1
      %p72 = scmp.eq.s32.totalorder %s13, 1
      %p73 = scmp.ne.s32.totalorder %s68, %s70
      %p74 = scmp.eq.s32.totalorder %s13, 0
      %p75 = por %p73, %p74
      %p76 = scmp.ne.s32.totalorder %s68, %s70
      %p77 = scmp.eq.s32.totalorder %s18, 1
      %p78 = por %p76, %p77
      %p79 = scmp.ne.s32.totalorder %s70, %s71
      %p80 = scmp.eq.s32.totalorder %s18, 0
      %p81 = por %p79, %p80
      %p82 = scmp.ne.s32.totalorder %s70, %s71
      %p83 = scmp.eq.s32.totalorder %s19, 1
      %p84 = por %p82, %p83
      %p86 = scmp.ne.s32.totalorder %s71, %s85
      %p87 = scmp.eq.s32.totalorder %s19, 0
      %p88 = por %p86, %p87
      %s90 = sadd.s32 %s89, 1
      %p93 = scmp.eq.s32.totalorder %s13, 1
      %p94 = scmp.ne.s32.totalorder %s89, %s91
      %p95 = scmp.eq.s32.totalorder %s13, 0
      %p96 = por %p94, %p95
      %p97 = scmp.ne.s32.totalorder %s89, %s91
      %p98 = scmp.eq.s32.totalorder %s18, 1
      %p99 = por %p97, %p98
      %p100 = scmp.ne.s32.totalorder %s91, %s92
      %p101 = scmp.eq.s32.totalorder %s18, 0
      %p102 = por %p100, %p101
      %p103 = scmp.ne.s32.totalorder %s91, %s92
      %p104 = scmp.eq.s32.totalorder %s19, 1
      %p105 = por %p103, %p104
      %p107 = scmp.ne.s32.totalorder %s92, %s106
      %p108 = scmp.eq.s32.totalorder %s19, 0
      %p109 = por %p107, %p108
      %s111 = sadd.s32 %s110, 1
      %p114 = scmp.eq.s32.totalorder %s13, 1
      %p115 = scmp.ne.s32.totalorder %s110, %s112
      %p116 = scmp.eq.s32.totalorder %s13, 0
      %p117 = por %p115, %p116
      %p118 = scmp.ne.s32.totalorder %s110, %s112
      %p119 = scmp.eq.s32.totalorder %s18, 1
      %p120 = por %p118, %p119
      %p121 = scmp.ne.s32.totalorder %s112, %s113
      %p122 = scmp.eq.s32.totalorder %s18, 0
      %p123 = por %p121, %p122
      %p124 = scmp.ne.s32.totalorder %s112, %s113
      %p125 = scmp.eq.s32.totalorder %s19, 1
      %p126 = por %p124, %p125
      %p128 = scmp.ne.s32.totalorder %s113, %s127
      %p129 = scmp.eq.s32.totalorder %s19, 0
      %p130 = por %p128, %p129
      %s132 = sadd.s32 %s131, 1
      %p135 = scmp.eq.s32.totalorder %s13, 1
      %p136 = scmp.ne.s32.totalorder %s131, %s133
      %p137 = scmp.eq.s32.totalorder %s13, 0
      %p138 = por %p136, %p137
      %p139 = scmp.ne.s32.totalorder %s131, %s133
      %p140 = scmp.eq.s32.totalorder %s18, 1
      %p141 = por %p139, %p140
      %p142 = scmp.ne.s32.totalorder %s133, %s134
      %p143 = scmp.eq.s32.totalorder %s18, 0
      %p144 = por %p142, %p143
      %p145 = scmp.ne.s32.totalorder %s133, %s134
      %p146 = scmp.eq.s32.totalorder %s19, 1
      %p147 = por %p145, %p146
      %p149 = scmp.ne.s32.totalorder %s134, %s148
      %p150 = scmp.eq.s32.totalorder %s19, 0
      %p151 = por %p149, %p150
      %s153 = sadd.s32 %s152, 1
      %p156 = scmp.eq.s32.totalorder %s13, 1
      %p157 = scmp.ne.s32.totalorder %s152, %s154
      %p158 = scmp.eq.s32.totalorder %s13, 0
      %p159 = por %p157, %p158
      %p160 = scmp.ne.s32.totalorder %s152, %s154
      %p161 = scmp.eq.s32.totalorder %s18, 1
      %p162 = por %p160, %p161
      %p163 = scmp.ne.s32.totalorder %s154, %s155
      %p164 = scmp.eq.s32.totalorder %s18, 0
      %p165 = por %p163, %p164
      %p166 = scmp.ne.s32.totalorder %s154, %s155
      %p167 = scmp.eq.s32.totalorder %s19, 1
      %p168 = por %p166, %p167
      %p170 = scmp.ne.s32.totalorder %s155, %s169
      %p171 = scmp.eq.s32.totalorder %s19, 0
      %p172 = por %p170, %p171
      %s173 = ssub.s32 %s13, %s20
      %p174 = scmp.eq.s32.totalorder %s173, 0
      %s176 = sadd.s32 %s175, 1
      %s177 = scalar_select %p174, %s175, %s176
      %p180 = pneg %p174
      %p181 = scmp.eq.s32.totalorder %s13, 1
      %p182 = por %p180, %p181
      %p183 = scmp.ne.s32.totalorder %s175, %s178
      %p184 = scmp.eq.s32.totalorder %s13, 0
      %p185 = por %p183, %p184
      %p186 = scmp.ne.s32.totalorder %s175, %s178
      %p187 = scmp.eq.s32.totalorder %s18, 1
      %p188 = por %p186, %p187
      %p189 = scmp.ne.s32.totalorder %s178, %s179
      %p190 = scmp.eq.s32.totalorder %s18, 0
      %p191 = por %p189, %p190
      %p192 = scmp.ne.s32.totalorder %s178, %s179
      %p193 = scmp.eq.s32.totalorder %s19, 1
      %p194 = por %p192, %p193
      %p196 = scmp.ne.s32.totalorder %s179, %s195
      %p197 = scmp.eq.s32.totalorder %s19, 0
      %p198 = por %p196, %p197
      %p199 = scmp.le.s32.totalorder 1, %s13
      %p200 = scmp.lt.s32.totalorder %s13, 3
      %p201 = pnand %p199, %p200
      %p202 = pneg %p201
      // Predicated region
      $region9: #{simple_res_block.1} parent=5 // pred_check
        _
      $region10: #{simple_res_block.1} parent=5 // pred_check_branch
        %204 = sbr.rel (%p201) target = $region12
      $region11: #{simple_res_block.1} parent=5 // pred_region
        %s205 = ssub.s32 %s13, 1
        // Predicated region
        $region13: #{simple_res_block.1} parent=11 // pred_check
          %p206 = pneg %p60
        $region14: #{simple_res_block.1} parent=11 // pred_check_branch
          %208 = sbr.rel (%p206) target = $region16
        $region15: #{simple_res_block.1} parent=11 // pred_region
          _
        $region16: #{simple_res_block.1} parent=11 // pred_fallthru
          _
        // Predicated region
        $region17: #{simple_res_block.1} parent=11 // pred_check
          %p209 = pneg %p81
        $region18: #{simple_res_block.1} parent=11 // pred_check_branch
          %211 = sbr.rel (%p209) target = $region20
        $region19: #{simple_res_block.1} parent=11 // pred_region
          _
        $region20: #{simple_res_block.1} parent=11 // pred_fallthru
          _
        // Predicated region
        $region21: #{simple_res_block.1} parent=11 // pred_check
          %p212 = pneg %p102
        $region22: #{simple_res_block.1} parent=11 // pred_check_branch
          %214 = sbr.rel (%p212) target = $region24
        $region23: #{simple_res_block.1} parent=11 // pred_region
          _
        $region24: #{simple_res_block.1} parent=11 // pred_fallthru
          _
        // Predicated region
        $region25: #{simple_res_block.1} parent=11 // pred_check
          %p215 = pneg %p123
        $region26: #{simple_res_block.1} parent=11 // pred_check_branch
          %217 = sbr.rel (%p215) target = $region28
        $region27: #{simple_res_block.1} parent=11 // pred_region
          _
        $region28: #{simple_res_block.1} parent=11 // pred_fallthru
          _
        // Predicated region
        $region29: #{simple_res_block.1} parent=11 // pred_check
          %p218 = pneg %p144
        $region30: #{simple_res_block.1} parent=11 // pred_check_branch
          %220 = sbr.rel (%p218) target = $region32
        $region31: #{simple_res_block.1} parent=11 // pred_region
          _
        $region32: #{simple_res_block.1} parent=11 // pred_fallthru
          _
        // Predicated region
        $region33: #{simple_res_block.1} parent=11 // pred_check
          %p221 = pneg %p165
        $region34: #{simple_res_block.1} parent=11 // pred_check_branch
          %223 = sbr.rel (%p221) target = $region36
        $region35: #{simple_res_block.1} parent=11 // pred_region
          _
        $region36: #{simple_res_block.1} parent=11 // pred_fallthru
          _
      $region12: #{simple_res_block.1} parent=5 // pred_fallthru
        _
      %p224 = scmp.lt.s32.totalorder %s13, 2
      // Predicated region
      $region37: #{simple_res_block.1} parent=5 // pred_check
        %p225 = pneg %p224
      $region38: #{simple_res_block.1} parent=5 // pred_check_branch
        %227 = sbr.rel (%p225) target = $region40
      $region39: #{simple_res_block.1} parent=5 // pred_region
        // Predicated region
        $region41: #{simple_res_block.1} parent=39 // pred_check
          %p228 = pneg %p33
        $region42: #{simple_res_block.1} parent=39 // pred_check_branch
          %230 = sbr.rel (%p228) target = $region44
        $region43: #{simple_res_block.1} parent=39 // pred_region
          %s231 = smul.u32 2, %s13
          %s232 = ssub.s32 3, %s231
          %p233 = scmp.lt.s32.totalorder %s232, 2
          %s234 = scalar_select %p233, %s232, 2
          %s235 = smul.u32 8, %s234
          %p236 = scmp.lt.s32.totalorder %s231, 2
          %s237 = scalar_select %p236, %s231, 2
          %s238 = smul.addr %s237, 8
          %s239 = scalar_lea.vmem %s0, %s238
          %s240 = smul.u32 2, %s13
          %s241 = ssub.s32 3, %s240
          %p242 = scmp.lt.s32.totalorder %s241, 2
          %s243 = scalar_select %p242, %s241, 2
          %s244 = smul.u32 8, %s243
        $region44: #{simple_res_block.1} parent=39 // pred_fallthru
          _
      $region40: #{simple_res_block.1} parent=5 // pred_fallthru
        _
      %p245 = scmp.le.s32.totalorder 1, %s13
      %p246 = scmp.lt.s32.totalorder %s13, 3
      %p247 = pnand %p245, %p246
      %p248 = pneg %p247
      // Predicated region
      $region45: #{simple_res_block.1} parent=5 // pred_check
        _
      $region46: #{simple_res_block.1} parent=5 // pred_check_branch
        %250 = sbr.rel (%p247) target = $region48
      $region47: #{simple_res_block.1} parent=5 // pred_region
        %s251 = ssub.s32 %s13, 1
        %s252 = smul.u32 2, %s18
        %s253 = ssub.s32 3, %s252
        %p254 = scmp.lt.s32.totalorder %s253, 2
        %s255 = scalar_select %p254, %s253, 2
        %s256 = smul.u32 8, %s255
        %p257 = scmp.lt.s32.totalorder %s252, 2
        %s258 = scalar_select %p257, %s252, 2
        %s259 = smul.addr %s258, 8
        %s260 = scalar_lea.vmem %s0, %s259
        %p261 = pneg %p39
        %p262 = pneg %p36
        %p263 = pneg %p60
        %p264 = pneg %p57
        %p265 = pneg %p81
        %p266 = pneg %p78
        %p267 = pneg %p102
        %p268 = pneg %p99
        %p269 = pneg %p123
        %p270 = pneg %p120
        %p271 = pneg %p144
        %p272 = pneg %p141
        %p273 = pneg %p165
        %p274 = pneg %p162
        %p275 = pneg %p191
        %p276 = pneg %p188
        %s277 = sand.u32 %s178, 1
        %s278 = sand.u32 %s178, 1
        %s279 = smul.addr %s278, 16
        %s280 = scalar_lea.vmem [#allocation2], %s279
        %s281 = smul.u32 2, %s18
        %s282 = ssub.s32 3, %s281
        %p283 = scmp.lt.s32.totalorder %s282, 2
        %s284 = scalar_select %p283, %s282, 2
        %s285 = smul.u32 8, %s284
        %p286 = scmp.lt.s32.totalorder %s281, 2
        %s287 = scalar_select %p286, %s281, 2
        %s288 = smul.addr %s287, 8
        %s289 = scalar_lea.vmem %s0, %s288
        %s290 = smul.u32 2, %s18
        %s291 = ssub.s32 3, %s290
        %p292 = scmp.lt.s32.totalorder %s291, 2
        %s293 = scalar_select %p292, %s291, 2
        %s294 = smul.u32 8, %s293
        %s295 = smul.u32 2, %s18
        %s296 = ssub.s32 3, %s295
        %p297 = scmp.lt.s32.totalorder %s296, 2
        %s298 = scalar_select %p297, %s296, 2
        %s299 = smul.u32 8, %s298
        %v300 = vld [vmem:[%s289] sm:$0xff]
        %v301 = vld [vmem:[%s289 + $0x8] sm:$0xff]
        %302 = vadd.xlane.f32.xlu0 %v300
        %v303 = vpop.xlane.xlu0 %302
        %304 = vadd.xlane.f32.xlu0 %v301
        %v305 = vpop.xlane.xlu0 %304
        %v306 = vmul.f32 %v303, 0.03125
        %v307 = vmul.f32 %v305, 0.03125
        %v308 = vmul.f32 %v300, %v300
        %v309 = vmul.f32 %v301, %v301
        %310 = vadd.xlane.f32.xlu0 %v308
        %v311 = vpop.xlane.xlu0 %310
        %312 = vadd.xlane.f32.xlu0 %v309
        %v313 = vpop.xlane.xlu0 %312
        %v314 = vmul.f32 %v311, 0.03125
        %v315 = vmul.f32 %v313, 0.03125
        %v316 = vmul.f32 %v306, %v306
        %v317 = vmul.f32 %v307, %v307
        %v318 = vsub.f32 %v314, %v316
        %v319 = vsub.f32 %v315, %v317
        %v320 = vsub.f32 %v300, %v306
        %v321 = vsub.f32 %v301, %v307
        %v322 = vadd.f32 %v318, 1e-05
        %v323 = vadd.f32 %v319, 1e-05
        %v324 = vrsqrt.pop %v322
        %v325 = vmul.f32 %v324, %v322
        %v326 = vmul.f32 %v325, %v324
        %v327 = vmul.f32 0.5, %v326
        %v328 = vsub.f32 1.5, %v327
        %v329 = vmul.f32 %v324, %v328
        %vm330 = vweird.f32 %v322
        %vm331 = vweird.f32 %v324
        %vm332 = vmor %vm330, %vm331
        %v333 = vsel %vm332, %v324, %v329
        %v334 = vrsqrt.pop %v323
        %v335 = vmul.f32 %v334, %v323
        %v336 = vmul.f32 %v335, %v334
        %v337 = vmul.f32 0.5, %v336
        %v338 = vsub.f32 1.5, %v337
        %v339 = vmul.f32 %v334, %v338
        %vm340 = vweird.f32 %v323
        %vm341 = vweird.f32 %v334
        %vm342 = vmor %vm340, %vm341
        %v343 = vsel %vm342, %v334, %v339
        %v344 = vmul.f32 %v320, %v333
        %v345 = vmul.f32 %v321, %v343
        %v346 = vld [vmem:[%s1] sm:$0x1]
        %v348 = vperm.slane %v346, 0
        %v350 = vmul.f32 %v344, %v348
        %v351 = vmul.f32 %v345, %v348
        %v352 = vld [vmem:[%s2] sm:$0x1]
        %v354 = vperm.slane %v352, 0
        %v356 = vadd.f32 %v350, %v354
        %v357 = vadd.f32 %v351, %v354
        %v358 = vpack.c.bf16 %v357, %v356
        %v359 = vld [vmem:[%s3] sm:$0xf]
        %v360 = vld [vmem:[%s3 + $0x4] sm:$0xf]
        %v361 = vld [vmem:[%s3 + $0x8] sm:$0xf]
        %v362 = vld [vmem:[%s3 + $0xc] sm:$0xf]
        %v363 = vld [vmem:[%s3 + $0x10] sm:$0xf]
        %v364 = vld [vmem:[%s3 + $0x14] sm:$0xf]
        %v365 = vld [vmem:[%s3 + $0x18] sm:$0xf]
        %v366 = vld [vmem:[%s3 + $0x1c] sm:$0xf]
        %v367 = vld [vmem:[%s3 + $0x20] sm:$0xf]
        %v368 = vld [vmem:[%s3 + $0x24] sm:$0xf]
        %v369 = vld [vmem:[%s3 + $0x28] sm:$0xf]
        %v370 = vld [vmem:[%s3 + $0x2c] sm:$0xf]
        %v371 = vld [vmem:[%s3 + $0x30] sm:$0xf]
        %v372 = vld [vmem:[%s3 + $0x34] sm:$0xf]
        %v373 = vld [vmem:[%s3 + $0x38] sm:$0xf]
        %v374 = vld [vmem:[%s3 + $0x3c] sm:$0xf]
        %v375 = vld [vmem:[%s4] sm:$0x1]
        %v377 = vperm.slane %v375, 0
        %v395 = vunpack.c.l.b16 %v359
        %v396 = vunpack.c.l.b16 %v360
        %v397 = vunpack.c.l.b16 %v361
        %v398 = vunpack.c.l.b16 %v362
        %v399 = vunpack.c.l.b16 %v363
        %v400 = vunpack.c.l.b16 %v364
        %v401 = vunpack.c.l.b16 %v365
        %v402 = vunpack.c.l.b16 %v366
        %v403 = vunpack.c.l.b16 %v367
        %v404 = vunpack.c.l.b16 %v368
        %v405 = vunpack.c.l.b16 %v369
        %v406 = vunpack.c.l.b16 %v370
        %v407 = vunpack.c.l.b16 %v371
        %v408 = vunpack.c.l.b16 %v372
        %v409 = vunpack.c.l.b16 %v373
        %v410 = vunpack.c.l.b16 %v374
        %v411 = vpack.c.b16 %v396, %v395
        %v412 = vpack.c.b16 %v398, %v397
        %v413 = vpack.c.b16 %v400, %v399
        %v414 = vpack.c.b16 %v402, %v401
        %v415 = vpack.c.b16 %v404, %v403
        %v416 = vpack.c.b16 %v406, %v405
        %v417 = vpack.c.b16 %v408, %v407
        %v418 = vpack.c.b16 %v410, %v409
        %427 = vmatpush.bf16.msra.mxu0 %v418
        %428 = vmatpush.bf16.msra.mxu0 %v417
        %429 = vmatpush.bf16.msra.mxu0 %v416
        %430 = vmatpush.bf16.msra.mxu0 %v415
        %431 = vmatpush.bf16.msra.mxu0 %v414
        %432 = vmatpush.bf16.msra.mxu0 %v413
        %433 = vmatpush.bf16.msra.mxu0 %v412
        %434 = vmatpush.bf16.msra.mxu0 %v411
        %435 = vmatmul.bf16.gmra.mxu0 %v358
        %v436 = vpop.f32.mrf.mxu0
        %v437 = vadd.f32 %v377, %v436
        %v438 = vpop.f32.mrf.mxu0
        %v439 = vadd.f32 %v377, %v438
        %440 = vdwg.mxu0
        %v441 = vmul.f32 %v437, %v437
        %v442 = vmul.f32 %v439, %v439
        %v443 = vmul.f32 %v437, %v441
        %v444 = vmul.f32 %v439, %v442
        %v445 = vmul.f32 %v443, 0.044715
        %v446 = vmul.f32 %v444, 0.044715
        %v447 = vadd.f32 %v437, %v445
        %v448 = vadd.f32 %v439, %v446
        %v449 = vmul.f32 %v447, 0.7978846
        %v450 = vmul.f32 %v448, 0.7978846
        %v451 = vtanh.pop %v449
        %v452 = vtanh.pop %v450
        %v453 = vadd.f32 %v451, 1.0
        %v454 = vadd.f32 %v452, 1.0
        %v455 = vmul.f32 %v453, 0.5
        %v456 = vmul.f32 %v454, 0.5
        %v457 = vmul.f32 %v437, %v455
        %v458 = vmul.f32 %v439, %v456
        %v459 = vpack.c.bf16 %v458, %v457
        %v460 = vld [vmem:[%s5] sm:$0xf]
        %v461 = vld [vmem:[%s5 + $0x4] sm:$0xf]
        %v462 = vld [vmem:[%s5 + $0x8] sm:$0xf]
        %v463 = vld [vmem:[%s5 + $0xc] sm:$0xf]
        %v464 = vld [vmem:[%s5 + $0x10] sm:$0xf]
        %v465 = vld [vmem:[%s5 + $0x14] sm:$0xf]
        %v466 = vld [vmem:[%s5 + $0x18] sm:$0xf]
        %v467 = vld [vmem:[%s5 + $0x1c] sm:$0xf]
        %v468 = vld [vmem:[%s5 + $0x20] sm:$0xf]
        %v469 = vld [vmem:[%s5 + $0x24] sm:$0xf]
        %v470 = vld [vmem:[%s5 + $0x28] sm:$0xf]
        %v471 = vld [vmem:[%s5 + $0x2c] sm:$0xf]
        %v472 = vld [vmem:[%s5 + $0x30] sm:$0xf]
        %v473 = vld [vmem:[%s5 + $0x34] sm:$0xf]
        %v474 = vld [vmem:[%s5 + $0x38] sm:$0xf]
        %v475 = vld [vmem:[%s5 + $0x3c] sm:$0xf]
        %v476 = vld [vmem:[%s6] sm:$0x1]
        %v478 = vperm.slane %v476, 0
        %v496 = vunpack.c.l.b16 %v460
        %v497 = vunpack.c.l.b16 %v461
        %v498 = vunpack.c.l.b16 %v462
        %v499 = vunpack.c.l.b16 %v463
        %v500 = vunpack.c.l.b16 %v464
        %v501 = vunpack.c.l.b16 %v465
        %v502 = vunpack.c.l.b16 %v466
        %v503 = vunpack.c.l.b16 %v467
        %v504 = vunpack.c.l.b16 %v468
        %v505 = vunpack.c.l.b16 %v469
        %v506 = vunpack.c.l.b16 %v470
        %v507 = vunpack.c.l.b16 %v471
        %v508 = vunpack.c.l.b16 %v472
        %v509 = vunpack.c.l.b16 %v473
        %v510 = vunpack.c.l.b16 %v474
        %v511 = vunpack.c.l.b16 %v475
        %v512 = vpack.c.b16 %v497, %v496
        %v513 = vpack.c.b16 %v499, %v498
        %v514 = vpack.c.b16 %v501, %v500
        %v515 = vpack.c.b16 %v503, %v502
        %v516 = vpack.c.b16 %v505, %v504
        %v517 = vpack.c.b16 %v507, %v506
        %v518 = vpack.c.b16 %v509, %v508
        %v519 = vpack.c.b16 %v511, %v510
        %528 = vmatpush.bf16.msra.mxu0 %v519
        %529 = vmatpush.bf16.msra.mxu0 %v518
        %530 = vmatpush.bf16.msra.mxu0 %v517
        %531 = vmatpush.bf16.msra.mxu0 %v516
        %532 = vmatpush.bf16.msra.mxu0 %v515
        %533 = vmatpush.bf16.msra.mxu0 %v514
        %534 = vmatpush.bf16.msra.mxu0 %v513
        %535 = vmatpush.bf16.msra.mxu0 %v512
        %536 = vmatmul.bf16.gmra.mxu0 %v459
        %v537 = vpop.f32.mrf.mxu0
        %v538 = vadd.f32 %v478, %v537
        %v539 = vpop.f32.mrf.mxu0
        %v540 = vadd.f32 %v478, %v539
        %541 = vdwg.mxu0
        %v542 = vadd.f32 %v356, %v538
        %v543 = vadd.f32 %v357, %v540
        %544 = vst [vmem:[%s280] sm:$0xff] %v542
        %545 = vst [vmem:[%s280 + $0x8] sm:$0xff] %v543
        %s546 = sand.u32 %s178, 1
        %s547 = sand.u32 %s178, 1
        %s548 = smul.addr %s547, 16
        %s549 = scalar_lea.vmem [#allocation2], %s548
        // Predicated region
        $region49: #{simple_res_block.1} parent=47 // pred_check
          %p550 = pneg %p188
        $region50: #{simple_res_block.1} parent=47 // pred_check_branch
          %552 = sbr.rel (%p550) target = $region52
        $region51: #{simple_res_block.1} parent=47 // pred_region
          %s553 = smul.u32 2, %s18
          %s554 = ssub.s32 3, %s553
          %p555 = scmp.lt.s32.totalorder %s554, 2
          %s556 = scalar_select %p555, %s554, 2
          %s557 = smul.u32 8, %s556
          %p558 = scmp.ne.s32.totalorder 0, %s557
          %s559 = smul.addr %s553, 8
          %s560 = scalar_lea.vmem %s7, %s559
          // Predicated region
          $region53: #{simple_res_block.1} parent=51 // pred_check
            %p561 = pneg %p558
          $region54: #{simple_res_block.1} parent=51 // pred_check_branch
            %563 = sbr.rel (%p561) target = $region56
          $region55: #{simple_res_block.1} parent=51 // pred_region
            // Predicated region
            $region57: #{simple_res_block.1} parent=55 // pred_check
              _
            $region58: #{simple_res_block.1} parent=55 // pred_check_branch
              %565 = sbr.rel (0) target = $region60
            $region59: #{simple_res_block.1} parent=55 // pred_region
              // Predicated region
              $region79: #{simple_res_block.1} parent=59 // pred_check
                _
              $region80: #{simple_res_block.1} parent=59 // pred_check_branch
                %617 = sbr.rel (0) target = $region82
              $region81: #{simple_res_block.1} parent=59 // pred_region
                %s618 = sshrl.u32 %s556, 1
                // While loop
                $region83: #{simple_res_block.1} parent=81 // loop_pre_header
                  _
                $region84: #{simple_res_block.1} parent=81 // loop_header
                  %s620 = sphi 0, %s622
                  %p621 = scmp.ge.s32.totalorder %s620, %s618
                  %s625 = sphi 0, %s634
                  %s626 = sphi %s549, %s637
                  %s627 = sphi %s560, %s638
                $region85: #{simple_res_block.1} parent=81 // loop_header_branch
                  %624 = sbr.rel (%p621) target = $region89
                $region86: #{simple_res_block.1} parent=81 // loop_body
                  %v628 = vld [vmem:[%s626] sm:$0xff]
                  %629 = vst [vmem:[%s627] sm:$0xff] %v628
                  %v630 = vld [vmem:[%s626 + $0x8] sm:$0xff]
                  %631 = vst [vmem:[%s627 + $0x8] sm:$0xff] %v630
                  %s632 = sadd.s32 1, %s625
                  %p633 = scmp.ge.s32.totalorder %s632, %s618
                  %s634 = scalar_select %p633, 0, %s632
                  %s635 = smul.u32 %s634, 16
                  %s636 = smul.u32 %s634, 16
                  %s637 = scalar_lea.vmem %s549, %s635 [#allocation2]
                  %s638 = scalar_lea.vmem %s560, %s636
                $region87: #{simple_res_block.1} parent=81 // loop_footer
                  %s622 = sadd.s32 %s620, 1
                $region88: #{simple_res_block.1} parent=81 // loop_footer_branch
                  %619 = sbr.rel target = $region84
                $region89: #{simple_res_block.1} parent=81 // loop_exit
                  _
                %s639 = sshrl.u32 %s556, 1
                %s640 = sand.u32 %s556, 1
                %s641 = smul.u32 %s639, 2
                %s642 = smul.u32 8, %s641
                %s643 = scalar_lea.vmem %s549, %s642 [#allocation2]
                %s644 = smul.u32 8, %s641
                %s645 = scalar_lea.vmem %s560, %s644
                // While loop
                $region90: #{simple_res_block.1} parent=81 // loop_pre_header
                  _
                $region91: #{simple_res_block.1} parent=81 // loop_header
                  %s647 = sphi 0, %s649
                  %p648 = scmp.ge.s32.totalorder %s647, %s640
                  %s652 = sphi 0, %s659
                  %s653 = sphi %s643, %s662
                  %s654 = sphi %s645, %s663
                $region92: #{simple_res_block.1} parent=81 // loop_header_branch
                  %651 = sbr.rel (%p648) target = $region96
                $region93: #{simple_res_block.1} parent=81 // loop_body
                  %v655 = vld [vmem:[%s653] sm:$0xff]
                  %656 = vst [vmem:[%s654] sm:$0xff] %v655
                  %s657 = sadd.s32 1, %s652
                  %p658 = scmp.ge.s32.totalorder %s657, %s640
                  %s659 = scalar_select %p658, 0, %s657
                  %s660 = smul.u32 %s659, 8
                  %s661 = smul.u32 %s659, 8
                  %s662 = scalar_lea.vmem %s643, %s660 [#allocation2]
                  %s663 = scalar_lea.vmem %s645, %s661
                $region94: #{simple_res_block.1} parent=81 // loop_footer
                  %s649 = sadd.s32 %s647, 1
                $region95: #{simple_res_block.1} parent=81 // loop_footer_branch
                  %646 = sbr.rel target = $region91
                $region96: #{simple_res_block.1} parent=81 // loop_exit
                  _
              $region82: #{simple_res_block.1} parent=59 // pred_fallthru
                _
              // Predicated region
              $region97: #{simple_res_block.1} parent=59 // pred_check
                _
              $region98: #{simple_res_block.1} parent=59 // pred_check_branch
                %665 = sbr.rel target = $region100
              $region99: #{simple_res_block.1} parent=59 // pred_region
                _
              $region100: #{simple_res_block.1} parent=59 // pred_fallthru
                _
            $region60: #{simple_res_block.1} parent=55 // pred_fallthru
              _
            // Predicated region
            $region61: #{simple_res_block.1} parent=55 // pred_check
              _
            $region62: #{simple_res_block.1} parent=55 // pred_check_branch
              %567 = sbr.rel target = $region64
            $region63: #{simple_res_block.1} parent=55 // pred_region
              %s569 = ssub.s32 256, 1
              %s570 = sshrl.u32 %s556, 1
              // While loop
              $region65: #{simple_res_block.1} parent=63 // loop_pre_header
                _
              $region66: #{simple_res_block.1} parent=63 // loop_header
                %s572 = sphi 0, %s574
                %p573 = scmp.ge.s32.totalorder %s572, %s570
                %s577 = sphi 0, %s586
                %s578 = sphi %s549, %s589
                %s579 = sphi %s560, %s590
              $region67: #{simple_res_block.1} parent=63 // loop_header_branch
                %576 = sbr.rel (%p573) target = $region71
              $region68: #{simple_res_block.1} parent=63 // loop_body
                %v580 = vld [vmem:[%s578] sm:%s569]
                %581 = vst [vmem:[%s579] sm:%s569] %v580
                %v582 = vld [vmem:[%s578 + $0x8] sm:%s569]
                %583 = vst [vmem:[%s579 + $0x8] sm:%s569] %v582
                %s584 = sadd.s32 1, %s577
                %p585 = scmp.ge.s32.totalorder %s584, %s570
                %s586 = scalar_select %p585, 0, %s584
                %s587 = smul.u32 %s586, 16
                %s588 = smul.u32 %s586, 16
                %s589 = scalar_lea.vmem %s549, %s587 [#allocation2]
                %s590 = scalar_lea.vmem %s560, %s588
              $region69: #{simple_res_block.1} parent=63 // loop_footer
                %s574 = sadd.s32 %s572, 1
              $region70: #{simple_res_block.1} parent=63 // loop_footer_branch
                %571 = sbr.rel target = $region66
              $region71: #{simple_res_block.1} parent=63 // loop_exit
                _
              %s591 = sshrl.u32 %s556, 1
              %s592 = sand.u32 %s556, 1
              %s593 = smul.u32 %s591, 2
              %s594 = smul.u32 8, %s593
              %s595 = scalar_lea.vmem %s549, %s594 [#allocation2]
              %s596 = smul.u32 8, %s593
              %s597 = scalar_lea.vmem %s560, %s596
              // While loop
              $region72: #{simple_res_block.1} parent=63 // loop_pre_header
                _
              $region73: #{simple_res_block.1} parent=63 // loop_header
                %s599 = sphi 0, %s601
                %p600 = scmp.ge.s32.totalorder %s599, %s592
                %s604 = sphi 0, %s611
                %s605 = sphi %s595, %s614
                %s606 = sphi %s597, %s615
              $region74: #{simple_res_block.1} parent=63 // loop_header_branch
                %603 = sbr.rel (%p600) target = $region78
              $region75: #{simple_res_block.1} parent=63 // loop_body
                %v607 = vld [vmem:[%s605] sm:%s569]
                %608 = vst [vmem:[%s606] sm:%s569] %v607
                %s609 = sadd.s32 1, %s604
                %p610 = scmp.ge.s32.totalorder %s609, %s592
                %s611 = scalar_select %p610, 0, %s609
                %s612 = smul.u32 %s611, 8
                %s613 = smul.u32 %s611, 8
                %s614 = scalar_lea.vmem %s595, %s612 [#allocation2]
                %s615 = scalar_lea.vmem %s597, %s613
              $region76: #{simple_res_block.1} parent=63 // loop_footer
                %s601 = sadd.s32 %s599, 1
              $region77: #{simple_res_block.1} parent=63 // loop_footer_branch
                %598 = sbr.rel target = $region73
              $region78: #{simple_res_block.1} parent=63 // loop_exit
                _
            $region64: #{simple_res_block.1} parent=55 // pred_fallthru
              _
          $region56: #{simple_res_block.1} parent=51 // pred_fallthru
            _
          %666 = vnop
        $region52: #{simple_res_block.1} parent=47 // pred_fallthru
          _
      $region48: #{simple_res_block.1} parent=5 // pred_fallthru
        _
      %p667 = scmp.le.s32.totalorder 2, %s13
      // Predicated region
      $region101: #{simple_res_block.1} parent=5 // pred_check
        %p668 = pneg %p667
      $region102: #{simple_res_block.1} parent=5 // pred_check_branch
        %670 = sbr.rel (%p668) target = $region104
      $region103: #{simple_res_block.1} parent=5 // pred_region
        %s671 = ssub.s32 %s13, 2
        // Predicated region
        $region105: #{simple_res_block.1} parent=103 // pred_check
          %p672 = pneg %p194
        $region106: #{simple_res_block.1} parent=103 // pred_check_branch
          %674 = sbr.rel (%p672) target = $region108
        $region107: #{simple_res_block.1} parent=103 // pred_region
          %s675 = sand.u32 %s179, 1
          %s676 = sand.u32 %s179, 1
          %s677 = smul.addr %s676, 16
          %s678 = scalar_lea.vmem [#allocation2], %s677
        $region108: #{simple_res_block.1} parent=103 // pred_fallthru
          _
      $region104: #{simple_res_block.1} parent=5 // pred_fallthru
        _
    $region6: #{simple_res_block.1} parent=1 // loop_footer
      %s17 = sadd.s32 1, %s13
    $region7: #{simple_res_block.1} parent=1 // loop_footer_branch
      %12 = sbr.rel target = $region3
    $region8: #{simple_res_block.1} parent=1 // loop_exit
      _

</llo_original>
